<compile_context>
chip_gen: v7x
topology: tpu7x:2x2x1
jax: 0.10.0
libtpu: 0.0.40
codegen_flags: <defaults>
</compile_context>

<pallas_src>
import functools

import jax
import jax.numpy as jnp
from jax.experimental import pallas as pl
from jax.experimental.pallas import tpu as pltpu


def _distill_kl_kernel(ys_ref, yt_ref, out_ref, *, inv_t):
    # One (tb, C) tile of student / teacher logits; math in f32.
    ys = ys_ref[...].astype(jnp.float32) * inv_t
    yt = yt_ref[...].astype(jnp.float32) * inv_t

    # Max-stabilized shifted logits.
    zs = ys - jnp.max(ys, axis=-1, keepdims=True)
    zt = yt - jnp.max(yt, axis=-1, keepdims=True)

    # Partition functions; exp(zt) is reused for both S_t and the cross term.
    s_s = jnp.sum(jnp.exp(zs), axis=-1, keepdims=True)
    e_t = jnp.exp(zt)
    s_t = jnp.sum(e_t, axis=-1, keepdims=True)

    # sum_c p_t*(logp_t - logp_s) = (1/S_t)*sum_c e_t*(zt - zs) + log(S_s/S_t)
    cross = jnp.sum(e_t * (zt - zs), axis=-1, keepdims=True)
    out_ref[...] = cross / s_t + jnp.log(s_s / s_t)


def _pick_row_tile(B, C, in_itemsize, row_align, vmem_budget_bytes=24 << 20):
    """Largest legal row tile whose working set fits a conservative VMEM budget.

    Working set per row ~= 2 inputs x 2 pipeline buffers x C x itemsize plus a
    handful of full-tile f32 temporaries kept live by the kernel body.
    """
    bytes_per_row = C * (2 * 2 * in_itemsize + 6 * 4)
    cap = max(row_align, vmem_budget_bytes // max(bytes_per_row, 1))
    cap = min(cap, 2048)
    if B <= cap:
        return B  # single block == full array -> always layout-legal
    if B % row_align != 0:
        # Cannot tile the batch legally; take one big block (rare edge case).
        return B
    tb = (cap // row_align) * row_align
    while tb >= row_align and B % tb != 0:
        tb -= row_align
    return tb if tb >= row_align else B


def distill_kl(y_s, y_t, T, is_ca=False, *, tb=None):
    """Pallas implementation of DistillKL.forward(y_s, y_t, is_ca)."""
    B, C = y_s.shape
    assert y_t.shape == (B, C)

    itemsize = max(jnp.dtype(y_s.dtype).itemsize, jnp.dtype(y_t.dtype).itemsize)
    # Sub-32-bit inputs pack more rows per vreg sublane: keep tb aligned.
    row_align = 8 if itemsize >= 4 else (16 if itemsize == 2 else 32)
    if tb is None:
        tb = _pick_row_tile(B, C, itemsize, row_align)
    assert B % tb == 0, "batch must be divisible by the row tile"

    kernel = functools.partial(_distill_kl_kernel, inv_t=1.0 / float(T))

    row_kl = pl.pallas_call(
        kernel,
        out_shape=jax.ShapeDtypeStruct((B, 1), jnp.float32),
        grid_spec=pltpu.PrefetchScalarGridSpec(
            num_scalar_prefetch=0,
            grid=(B // tb,),
            in_specs=[
                pl.BlockSpec((tb, C), lambda i: (i, 0)),
                pl.BlockSpec((tb, C), lambda i: (i, 0)),
            ],
            out_specs=pl.BlockSpec((tb, 1), lambda i: (i, 0)),
        ),
        compiler_params=pltpu.CompilerParams(
            dimension_semantics=("parallel",),
            vmem_limit_bytes=48 * 1024 * 1024,
        ),
    )(y_s, y_t)

    row_kl = row_kl[:, 0]          # [B] per-row KL (class axis reduced in-kernel)
    scale = float(T) ** 2

    if is_ca:
        # KLDivLoss(reduction='none') * T^2, summed over classes -> [B]
        return row_kl * scale
    # KLDivLoss(reduction='batchmean') * T^2 -> scalar
    return jnp.sum(row_kl) * (scale / B)


def _distill_kl_ref(y_s, y_t, T, is_ca=False):
    """Pure-JAX reference for sanity checking."""
    p_s = jax.nn.log_softmax(y_s / T, axis=1)
    logp_t = jax.nn.log_softmax(y_t / T, axis=1)
    p_t = jnp.exp(logp_t)
    kl = p_t * (logp_t - p_s)
    if is_ca:
        return (kl * T ** 2).sum(-1)
    return kl.sum() / y_s.shape[0] * T ** 2


if __name__ == "__main__":
    key = jax.random.PRNGKey(0)
    k1, k2 = jax.random.split(key)

    B, C = 64, 256      # small logits: batch=64, num_classes=256
    T = 4.0             # distillation temperature

    y_s = jax.random.normal(k1, (B, C), dtype=jnp.float32)
    y_t = jax.random.normal(k2, (B, C), dtype=jnp.float32)

    # Default path (auto tile -> single big block here).
    loss = jax.block_until_ready(distill_kl(y_s, y_t, T, is_ca=False))
    loss_ca = jax.block_until_ready(distill_kl(y_s, y_t, T, is_ca=True))
    # Explicit small tile to exercise the multi-step pipelined grid path.
    loss_tiled = jax.block_until_ready(distill_kl(y_s, y_t, T, is_ca=False, tb=16))

    ref = _distill_kl_ref(y_s, y_t, T, is_ca=False)
    ref_ca = _distill_kl_ref(y_s, y_t, T, is_ca=True)
    assert jnp.allclose(loss, ref, atol=1e-4, rtol=1e-4)
    assert jnp.allclose(loss_tiled, ref, atol=1e-4, rtol=1e-4)
    assert jnp.allclose(loss_ca, ref_ca, atol=1e-4, rtol=1e-4)

    print("KERNEL_OK")
</pallas_src>

<mosaic_0001>
module attributes {stable_mosaic.version = 11 : i64} {
  func.func @_distill_kl_kernel(%arg0: i32, %arg1: memref<64x256xf32, #tpu.memory_space<vmem>>, %arg2: memref<64x256xf32, #tpu.memory_space<vmem>>, %arg3: memref<64x1xf32, #tpu.memory_space<vmem>>) attributes {dimension_semantics = [#tpu.dimension_semantics<parallel>], iteration_bounds = array<i64: 1>, scalar_prefetch = 0 : i64, scratch_operands = 0 : i64, tpu.core_type = #tpu.core_type<tc>, window_params = [{transform_indices = @transform_0, window_bounds = array<i64: 64, 256>}, {transform_indices = @transform_1, window_bounds = array<i64: 64, 256>}, {transform_indices = @transform_2, window_bounds = array<i64: 64, 1>}]} {
    %c0 = arith.constant 0 : index
    %c0_0 = arith.constant 0 : index
    %0 = vector.load %arg1[%c0, %c0_0] : memref<64x256xf32, #tpu.memory_space<vmem>>, vector<64x256xf32>
    %cst = arith.constant 2.500000e-01 : f32
    %1 = vector.broadcast %cst : f32 to vector<64x256xf32>
    %2 = arith.mulf %0, %1 : vector<64x256xf32>
    %c0_1 = arith.constant 0 : index
    %c0_2 = arith.constant 0 : index
    %3 = vector.load %arg2[%c0_1, %c0_2] : memref<64x256xf32, #tpu.memory_space<vmem>>, vector<64x256xf32>
    %cst_3 = arith.constant 2.500000e-01 : f32
    %4 = vector.broadcast %cst_3 : f32 to vector<64x256xf32>
    %5 = arith.mulf %3, %4 : vector<64x256xf32>
    %cst_4 = arith.constant dense<0xFF800000> : vector<64xf32>
    %6 = vector.multi_reduction <maximumf>, %2, %cst_4 [1] : vector<64x256xf32> to vector<64xf32>
    %7 = vector.shape_cast %6 : vector<64xf32> to vector<64x1xf32>
    %8 = vector.broadcast %7 : vector<64x1xf32> to vector<64x256xf32>
    %9 = arith.subf %2, %8 : vector<64x256xf32>
    %cst_5 = arith.constant dense<0xFF800000> : vector<64xf32>
    %10 = vector.multi_reduction <maximumf>, %5, %cst_5 [1] : vector<64x256xf32> to vector<64xf32>
    %11 = vector.shape_cast %10 : vector<64xf32> to vector<64x1xf32>
    %12 = vector.broadcast %11 : vector<64x1xf32> to vector<64x256xf32>
    %13 = arith.subf %5, %12 : vector<64x256xf32>
    %14 = math.exp %9 : vector<64x256xf32>
    %cst_6 = arith.constant dense<0.000000e+00> : vector<64xf32>
    %15 = vector.multi_reduction <add>, %14, %cst_6 [1] : vector<64x256xf32> to vector<64xf32>
    %16 = vector.shape_cast %15 : vector<64xf32> to vector<64x1xf32>
    %17 = math.exp %13 : vector<64x256xf32>
    %cst_7 = arith.constant dense<0.000000e+00> : vector<64xf32>
    %18 = vector.multi_reduction <add>, %17, %cst_7 [1] : vector<64x256xf32> to vector<64xf32>
    %19 = vector.shape_cast %18 : vector<64xf32> to vector<64x1xf32>
    %20 = arith.subf %13, %9 : vector<64x256xf32>
    %21 = arith.mulf %17, %20 : vector<64x256xf32>
    %cst_8 = arith.constant dense<0.000000e+00> : vector<64xf32>
    %22 = vector.multi_reduction <add>, %21, %cst_8 [1] : vector<64x256xf32> to vector<64xf32>
    %23 = vector.shape_cast %22 : vector<64xf32> to vector<64x1xf32>
    %24 = arith.divf %23, %19 : vector<64x1xf32>
    %25 = arith.divf %16, %19 : vector<64x1xf32>
    %26 = math.log %25 : vector<64x1xf32>
    %27 = arith.addf %24, %26 : vector<64x1xf32>
    %c0_9 = arith.constant 0 : index
    %c0_10 = arith.constant 0 : index
    %28 = vector.load %arg3[%c0_9, %c0_10] : memref<64x1xf32, #tpu.memory_space<vmem>>, vector<64x1xf32>
    tpu.vector_store %arg3[%c0_9, %c0_10], %27 {strides = array<i32>} : memref<64x1xf32, #tpu.memory_space<vmem>>, vector<64x1xf32>,
    return
  }
  func.func @transform_0(%arg0: i32) -> (i32, i32) {
    %c0_i32 = arith.constant 0 : i32
    %c0_i32_0 = arith.constant 0 : i32
    return %arg0, %c0_i32 : i32, i32
  }
  func.func @transform_1(%arg0: i32) -> (i32, i32) {
    %c0_i32 = arith.constant 0 : i32
    %c0_i32_0 = arith.constant 0 : i32
    return %arg0, %c0_i32 : i32, i32
  }
  func.func @transform_2(%arg0: i32) -> (i32, i32) {
    %c0_i32 = arith.constant 0 : i32
    %c0_i32_0 = arith.constant 0 : i32
    return %arg0, %c0_i32 : i32, i32
  }
}

</mosaic_0001>

<llo_original>
// kernel: tpu_custom_call.1
$region0: #{tpu_custom_call.1}
  #allocation0 [shape = 'u32[]', space=smem, size = 0x4, offset = 0x4, fixed_abs, tag = 'smem constant byte address 0x4 - core index']
  #allocation1 [shape = 'u32[144,128]{1,0:T(1,128)}', space=vmem, size = 0x12000, scoped, tag = 'internal scratch']
  %s0 = inlined_call_operand.hbm [shape: f32[64,256], index: 0, kind: input, shape index: {}]
  %s1 = inlined_call_operand.hbm [shape: f32[64,256], index: 1, kind: input, shape index: {}]
  %s2 = inlined_call_operand.vmem [shape: f32[64,1], index: 2, kind: output, shape index: {}]
  %s3 = sld [smem:[#allocation0]]
  $region26: #{tpu_custom_call.1} parent=0
    _
  %s5 = ssub.s32 1, %s3
  %s6 = scalar_select 0, %s5, %s3
  $region1: #{tpu_custom_call.1} parent=0
    #allocation2 [shape = 'u8[65536]{0}', space=vmem, size = 0x10000, scoped, tag = 'input window, operand 0, single buffered']
    #allocation3 [shape = 's32[1]{0}', space=sflag, size = 0x4, scoped, tag = 'scoped memory for tpu_custom_call.1']
    #allocation4 [shape = 'u8[65536]{0}', space=vmem, size = 0x10000, scoped, tag = 'input window, operand 1, single buffered']
    #allocation5 [shape = 's32[1]{0}', space=sflag, size = 0x4, scoped, tag = 'scoped memory for tpu_custom_call.1']
    %7 = vsyncpa [#allocation3], 0
    %8 = vsyncpa [#allocation5], 0
    // Predicated region
    $region2: #{tpu_custom_call.1} parent=1 // pred_check
      _
    $region3: #{tpu_custom_call.1} parent=1 // pred_check_branch
      %10 = sbr.rel (0) target = $region5
    $region4: #{tpu_custom_call.1} parent=1 // pred_region
      %s12 = ssub.s32 2048, 2048
      %13 = vsyncadd [#allocation3], %s12
      %s14 = sshll.u32 [#allocation2], 4
      %s15 = int_to_ptr.vmem [resolvable:$true] %s14
      %20 = dma.hbm_to_vmem [thread:$0]  %s0, 2048, %s15, [#allocation3], 256, 256, 16
    $region5: #{tpu_custom_call.1} parent=1 // pred_fallthru
      _
    // Predicated region
    $region6: #{tpu_custom_call.1} parent=1 // pred_check
      _
    $region7: #{tpu_custom_call.1} parent=1 // pred_check_branch
      %22 = sbr.rel (0) target = $region9
    $region8: #{tpu_custom_call.1} parent=1 // pred_region
      %s24 = ssub.s32 2048, 2048
      %25 = vsyncadd [#allocation5], %s24
      %s26 = sshll.u32 [#allocation4], 4
      %s27 = int_to_ptr.vmem [resolvable:$true] %s26
      %32 = dma.hbm_to_vmem [thread:$0]  %s1, 2048, %s27, [#allocation5], 256, 256, 16
    $region9: #{tpu_custom_call.1} parent=1 // pred_fallthru
      _
    // Predicated region
    $region10: #{tpu_custom_call.1} parent=1 // pred_check
      _
    $region11: #{tpu_custom_call.1} parent=1 // pred_check_branch
      %34 = sbr.rel (0) target = $region13
    $region12: #{tpu_custom_call.1} parent=1 // pred_region
      %35 = dma.done [#allocation3], 2048
    $region13: #{tpu_custom_call.1} parent=1 // pred_fallthru
      _
    // Predicated region
    $region14: #{tpu_custom_call.1} parent=1 // pred_check
      _
    $region15: #{tpu_custom_call.1} parent=1 // pred_check_branch
      %37 = sbr.rel (0) target = $region17
    $region16: #{tpu_custom_call.1} parent=1 // pred_region
      %38 = dma.done [#allocation5], 2048
    $region17: #{tpu_custom_call.1} parent=1 // pred_fallthru
      _
    %v39 = vld [vmem:[#allocation2] sm:$0xff]
    %v40 = vld [vmem:[#allocation2 + $0x8] sm:$0xff]
    %v41 = vld [vmem:[#allocation2 + $0x10] sm:$0xff]
    %v42 = vld [vmem:[#allocation2 + $0x18] sm:$0xff]
    %v43 = vld [vmem:[#allocation2 + $0x20] sm:$0xff]
    %v44 = vld [vmem:[#allocation2 + $0x28] sm:$0xff]
    %v45 = vld [vmem:[#allocation2 + $0x30] sm:$0xff]
    %v46 = vld [vmem:[#allocation2 + $0x38] sm:$0xff]
    %v47 = vld [vmem:[#allocation2 + $0x40] sm:$0xff]
    %v48 = vld [vmem:[#allocation2 + $0x48] sm:$0xff]
    %v49 = vld [vmem:[#allocation2 + $0x50] sm:$0xff]
    %v50 = vld [vmem:[#allocation2 + $0x58] sm:$0xff]
    %v51 = vld [vmem:[#allocation2 + $0x60] sm:$0xff]
    %v52 = vld [vmem:[#allocation2 + $0x68] sm:$0xff]
    %v53 = vld [vmem:[#allocation2 + $0x70] sm:$0xff]
    %v54 = vld [vmem:[#allocation2 + $0x78] sm:$0xff]
    %v55 = vmul.f32 %v39, 0.25
    %v56 = vmul.f32 %v40, 0.25
    %v57 = vmul.f32 %v41, 0.25
    %v58 = vmul.f32 %v42, 0.25
    %v59 = vmul.f32 %v43, 0.25
    %v60 = vmul.f32 %v44, 0.25
    %v61 = vmul.f32 %v45, 0.25
    %v62 = vmul.f32 %v46, 0.25
    %v63 = vmul.f32 %v47, 0.25
    %v64 = vmul.f32 %v48, 0.25
    %v65 = vmul.f32 %v49, 0.25
    %v66 = vmul.f32 %v50, 0.25
    %v67 = vmul.f32 %v51, 0.25
    %v68 = vmul.f32 %v52, 0.25
    %v69 = vmul.f32 %v53, 0.25
    %v70 = vmul.f32 %v54, 0.25
    %v71 = vld [vmem:[#allocation4] sm:$0xff]
    %v72 = vld [vmem:[#allocation4 + $0x8] sm:$0xff]
    %v73 = vld [vmem:[#allocation4 + $0x10] sm:$0xff]
    %v74 = vld [vmem:[#allocation4 + $0x18] sm:$0xff]
    %v75 = vld [vmem:[#allocation4 + $0x20] sm:$0xff]
    %v76 = vld [vmem:[#allocation4 + $0x28] sm:$0xff]
    %v77 = vld [vmem:[#allocation4 + $0x30] sm:$0xff]
    %v78 = vld [vmem:[#allocation4 + $0x38] sm:$0xff]
    %v79 = vld [vmem:[#allocation4 + $0x40] sm:$0xff]
    %v80 = vld [vmem:[#allocation4 + $0x48] sm:$0xff]
    %v81 = vld [vmem:[#allocation4 + $0x50] sm:$0xff]
    %v82 = vld [vmem:[#allocation4 + $0x58] sm:$0xff]
    %v83 = vld [vmem:[#allocation4 + $0x60] sm:$0xff]
    %v84 = vld [vmem:[#allocation4 + $0x68] sm:$0xff]
    %v85 = vld [vmem:[#allocation4 + $0x70] sm:$0xff]
    %v86 = vld [vmem:[#allocation4 + $0x78] sm:$0xff]
    %v87 = vmul.f32 %v71, 0.25
    %v88 = vmul.f32 %v72, 0.25
    %v89 = vmul.f32 %v73, 0.25
    %v90 = vmul.f32 %v74, 0.25
    %v91 = vmul.f32 %v75, 0.25
    %v92 = vmul.f32 %v76, 0.25
    %v93 = vmul.f32 %v77, 0.25
    %v94 = vmul.f32 %v78, 0.25
    %v95 = vmul.f32 %v79, 0.25
    %v96 = vmul.f32 %v80, 0.25
    %v97 = vmul.f32 %v81, 0.25
    %v98 = vmul.f32 %v82, 0.25
    %v99 = vmul.f32 %v83, 0.25
    %v100 = vmul.f32 %v84, 0.25
    %v101 = vmul.f32 %v85, 0.25
    %v102 = vmul.f32 %v86, 0.25
    %v103 = vmax.f32 %v55, %v56
    %104 = vmax.xlane.f32.xlu0 %v103
    %v105 = vpop.xlane.xlu0 %104
    %v106 = vmax.f32 %v57, %v58
    %107 = vmax.xlane.f32.xlu0 %v106
    %v108 = vpop.xlane.xlu0 %107
    %v109 = vmax.f32 %v59, %v60
    %110 = vmax.xlane.f32.xlu0 %v109
    %v111 = vpop.xlane.xlu0 %110
    %v112 = vmax.f32 %v61, %v62
    %113 = vmax.xlane.f32.xlu0 %v112
    %v114 = vpop.xlane.xlu0 %113
    %v115 = vmax.f32 %v63, %v64
    %116 = vmax.xlane.f32.xlu0 %v115
    %v117 = vpop.xlane.xlu0 %116
    %v118 = vmax.f32 %v65, %v66
    %119 = vmax.xlane.f32.xlu0 %v118
    %v120 = vpop.xlane.xlu0 %119
    %v121 = vmax.f32 %v67, %v68
    %122 = vmax.xlane.f32.xlu0 %v121
    %v123 = vpop.xlane.xlu0 %122
    %v124 = vmax.f32 %v69, %v70
    %125 = vmax.xlane.f32.xlu0 %v124
    %v126 = vpop.xlane.xlu0 %125
    %v127 = vsub.f32 %v55, %v105
    %v128 = vsub.f32 %v56, %v105
    %v129 = vsub.f32 %v57, %v108
    %v130 = vsub.f32 %v58, %v108
    %v131 = vsub.f32 %v59, %v111
    %v132 = vsub.f32 %v60, %v111
    %v133 = vsub.f32 %v61, %v114
    %v134 = vsub.f32 %v62, %v114
    %v135 = vsub.f32 %v63, %v117
    %v136 = vsub.f32 %v64, %v117
    %v137 = vsub.f32 %v65, %v120
    %v138 = vsub.f32 %v66, %v120
    %v139 = vsub.f32 %v67, %v123
    %v140 = vsub.f32 %v68, %v123
    %v141 = vsub.f32 %v69, %v126
    %v142 = vsub.f32 %v70, %v126
    %v143 = vmax.f32 %v87, %v88
    %144 = vmax.xlane.f32.xlu0 %v143
    %v145 = vpop.xlane.xlu0 %144
    %v146 = vmax.f32 %v89, %v90
    %147 = vmax.xlane.f32.xlu0 %v146
    %v148 = vpop.xlane.xlu0 %147
    %v149 = vmax.f32 %v91, %v92
    %150 = vmax.xlane.f32.xlu0 %v149
    %v151 = vpop.xlane.xlu0 %150
    %v152 = vmax.f32 %v93, %v94
    %153 = vmax.xlane.f32.xlu0 %v152
    %v154 = vpop.xlane.xlu0 %153
    %v155 = vmax.f32 %v95, %v96
    %156 = vmax.xlane.f32.xlu0 %v155
    %v157 = vpop.xlane.xlu0 %156
    %v158 = vmax.f32 %v97, %v98
    %159 = vmax.xlane.f32.xlu0 %v158
    %v160 = vpop.xlane.xlu0 %159
    %v161 = vmax.f32 %v99, %v100
    %162 = vmax.xlane.f32.xlu0 %v161
    %v163 = vpop.xlane.xlu0 %162
    %v164 = vmax.f32 %v101, %v102
    %165 = vmax.xlane.f32.xlu0 %v164
    %v166 = vpop.xlane.xlu0 %165
    %v167 = vsub.f32 %v87, %v145
    %v168 = vsub.f32 %v88, %v145
    %v169 = vsub.f32 %v89, %v148
    %v170 = vsub.f32 %v90, %v148
    %v171 = vsub.f32 %v91, %v151
    %v172 = vsub.f32 %v92, %v151
    %v173 = vsub.f32 %v93, %v154
    %v174 = vsub.f32 %v94, %v154
    %v175 = vsub.f32 %v95, %v157
    %v176 = vsub.f32 %v96, %v157
    %v177 = vsub.f32 %v97, %v160
    %v178 = vsub.f32 %v98, %v160
    %v179 = vsub.f32 %v99, %v163
    %v180 = vsub.f32 %v100, %v163
    %v181 = vsub.f32 %v101, %v166
    %v182 = vsub.f32 %v102, %v166
    %v183 = vmul.f32 %v127, 1.442695
    %v184 = vpow.pop %v183
    %v185 = vmul.f32 %v128, 1.442695
    %v186 = vpow.pop %v185
    %v187 = vmul.f32 %v129, 1.442695
    %v188 = vpow.pop %v187
    %v189 = vmul.f32 %v130, 1.442695
    %v190 = vpow.pop %v189
    %v191 = vmul.f32 %v131, 1.442695
    %v192 = vpow.pop %v191
    %v193 = vmul.f32 %v132, 1.442695
    %v194 = vpow.pop %v193
    %v195 = vmul.f32 %v133, 1.442695
    %v196 = vpow.pop %v195
    %v197 = vmul.f32 %v134, 1.442695
    %v198 = vpow.pop %v197
    %v199 = vmul.f32 %v135, 1.442695
    %v200 = vpow.pop %v199
    %v201 = vmul.f32 %v136, 1.442695
    %v202 = vpow.pop %v201
    %v203 = vmul.f32 %v137, 1.442695
    %v204 = vpow.pop %v203
    %v205 = vmul.f32 %v138, 1.442695
    %v206 = vpow.pop %v205
    %v207 = vmul.f32 %v139, 1.442695
    %v208 = vpow.pop %v207
    %v209 = vmul.f32 %v140, 1.442695
    %v210 = vpow.pop %v209
    %v211 = vmul.f32 %v141, 1.442695
    %v212 = vpow.pop %v211
    %v213 = vmul.f32 %v142, 1.442695
    %v214 = vpow.pop %v213
    %v215 = vadd.f32 %v184, %v186
    %216 = vadd.xlane.f32.xlu0 %v215
    %v217 = vpop.xlane.xlu0 %216
    %v218 = vadd.f32 %v188, %v190
    %219 = vadd.xlane.f32.xlu0 %v218
    %v220 = vpop.xlane.xlu0 %219
    %v221 = vadd.f32 %v192, %v194
    %222 = vadd.xlane.f32.xlu0 %v221
    %v223 = vpop.xlane.xlu0 %222
    %v224 = vadd.f32 %v196, %v198
    %225 = vadd.xlane.f32.xlu0 %v224
    %v226 = vpop.xlane.xlu0 %225
    %v227 = vadd.f32 %v200, %v202
    %228 = vadd.xlane.f32.xlu0 %v227
    %v229 = vpop.xlane.xlu0 %228
    %v230 = vadd.f32 %v204, %v206
    %231 = vadd.xlane.f32.xlu0 %v230
    %v232 = vpop.xlane.xlu0 %231
    %v233 = vadd.f32 %v208, %v210
    %234 = vadd.xlane.f32.xlu0 %v233
    %v235 = vpop.xlane.xlu0 %234
    %v236 = vadd.f32 %v212, %v214
    %237 = vadd.xlane.f32.xlu0 %v236
    %v238 = vpop.xlane.xlu0 %237
    %v239 = vmul.f32 %v167, 1.442695
    %v240 = vpow.pop %v239
    %v241 = vmul.f32 %v168, 1.442695
    %v242 = vpow.pop %v241
    %v243 = vmul.f32 %v169, 1.442695
    %v244 = vpow.pop %v243
    %v245 = vmul.f32 %v170, 1.442695
    %v246 = vpow.pop %v245
    %v247 = vmul.f32 %v171, 1.442695
    %v248 = vpow.pop %v247
    %v249 = vmul.f32 %v172, 1.442695
    %v250 = vpow.pop %v249
    %v251 = vmul.f32 %v173, 1.442695
    %v252 = vpow.pop %v251
    %v253 = vmul.f32 %v174, 1.442695
    %v254 = vpow.pop %v253
    %v255 = vmul.f32 %v175, 1.442695
    %v256 = vpow.pop %v255
    %v257 = vmul.f32 %v176, 1.442695
    %v258 = vpow.pop %v257
    %v259 = vmul.f32 %v177, 1.442695
    %v260 = vpow.pop %v259
    %v261 = vmul.f32 %v178, 1.442695
    %v262 = vpow.pop %v261
    %v263 = vmul.f32 %v179, 1.442695
    %v264 = vpow.pop %v263
    %v265 = vmul.f32 %v180, 1.442695
    %v266 = vpow.pop %v265
    %v267 = vmul.f32 %v181, 1.442695
    %v268 = vpow.pop %v267
    %v269 = vmul.f32 %v182, 1.442695
    %v270 = vpow.pop %v269
    %v271 = vadd.f32 %v240, %v242
    %272 = vadd.xlane.f32.xlu0 %v271
    %v273 = vpop.xlane.xlu0 %272
    %v274 = vadd.f32 %v244, %v246
    %275 = vadd.xlane.f32.xlu0 %v274
    %v276 = vpop.xlane.xlu0 %275
    %v277 = vadd.f32 %v248, %v250
    %278 = vadd.xlane.f32.xlu0 %v277
    %v279 = vpop.xlane.xlu0 %278
    %v280 = vadd.f32 %v252, %v254
    %281 = vadd.xlane.f32.xlu0 %v280
    %v282 = vpop.xlane.xlu0 %281
    %v283 = vadd.f32 %v256, %v258
    %284 = vadd.xlane.f32.xlu0 %v283
    %v285 = vpop.xlane.xlu0 %284
    %v286 = vadd.f32 %v260, %v262
    %287 = vadd.xlane.f32.xlu0 %v286
    %v288 = vpop.xlane.xlu0 %287
    %v289 = vadd.f32 %v264, %v266
    %290 = vadd.xlane.f32.xlu0 %v289
    %v291 = vpop.xlane.xlu0 %290
    %v292 = vadd.f32 %v268, %v270
    %293 = vadd.xlane.f32.xlu0 %v292
    %v294 = vpop.xlane.xlu0 %293
    %v295 = vsub.f32 %v167, %v127
    %v296 = vsub.f32 %v168, %v128
    %v297 = vsub.f32 %v169, %v129
    %v298 = vsub.f32 %v170, %v130
    %v299 = vsub.f32 %v171, %v131
    %v300 = vsub.f32 %v172, %v132
    %v301 = vsub.f32 %v173, %v133
    %v302 = vsub.f32 %v174, %v134
    %v303 = vsub.f32 %v175, %v135
    %v304 = vsub.f32 %v176, %v136
    %v305 = vsub.f32 %v177, %v137
    %v306 = vsub.f32 %v178, %v138
    %v307 = vsub.f32 %v179, %v139
    %v308 = vsub.f32 %v180, %v140
    %v309 = vsub.f32 %v181, %v141
    %v310 = vsub.f32 %v182, %v142
    %v311 = vmul.f32 %v240, %v295
    %v312 = vmul.f32 %v242, %v296
    %v313 = vmul.f32 %v244, %v297
    %v314 = vmul.f32 %v246, %v298
    %v315 = vmul.f32 %v248, %v299
    %v316 = vmul.f32 %v250, %v300
    %v317 = vmul.f32 %v252, %v301
    %v318 = vmul.f32 %v254, %v302
    %v319 = vmul.f32 %v256, %v303
    %v320 = vmul.f32 %v258, %v304
    %v321 = vmul.f32 %v260, %v305
    %v322 = vmul.f32 %v262, %v306
    %v323 = vmul.f32 %v264, %v307
    %v324 = vmul.f32 %v266, %v308
    %v325 = vmul.f32 %v268, %v309
    %v326 = vmul.f32 %v270, %v310
    %v327 = vadd.f32 %v311, %v312
    %328 = vadd.xlane.f32.xlu0 %v327
    %v329 = vpop.xlane.xlu0 %328
    %v330 = vadd.f32 %v313, %v314
    %331 = vadd.xlane.f32.xlu0 %v330
    %v332 = vpop.xlane.xlu0 %331
    %v333 = vadd.f32 %v315, %v316
    %334 = vadd.xlane.f32.xlu0 %v333
    %v335 = vpop.xlane.xlu0 %334
    %v336 = vadd.f32 %v317, %v318
    %337 = vadd.xlane.f32.xlu0 %v336
    %v338 = vpop.xlane.xlu0 %337
    %v339 = vadd.f32 %v319, %v320
    %340 = vadd.xlane.f32.xlu0 %v339
    %v341 = vpop.xlane.xlu0 %340
    %v342 = vadd.f32 %v321, %v322
    %343 = vadd.xlane.f32.xlu0 %v342
    %v344 = vpop.xlane.xlu0 %343
    %v345 = vadd.f32 %v323, %v324
    %346 = vadd.xlane.f32.xlu0 %v345
    %v347 = vpop.xlane.xlu0 %346
    %v348 = vadd.f32 %v325, %v326
    %349 = vadd.xlane.f32.xlu0 %v348
    %v350 = vpop.xlane.xlu0 %349
    %v351 = vrcp.pop %v273
    %v352 = vmul.f32 %v329, %v351
    %v353 = vrcp.pop %v276
    %v354 = vmul.f32 %v332, %v353
    %v355 = vrcp.pop %v279
    %v356 = vmul.f32 %v335, %v355
    %v357 = vrcp.pop %v282
    %v358 = vmul.f32 %v338, %v357
    %v359 = vrcp.pop %v285
    %v360 = vmul.f32 %v341, %v359
    %v361 = vrcp.pop %v288
    %v362 = vmul.f32 %v344, %v361
    %v363 = vrcp.pop %v291
    %v364 = vmul.f32 %v347, %v363
    %v365 = vrcp.pop %v294
    %v366 = vmul.f32 %v350, %v365
    %v367 = vmul.f32 %v217, %v351
    %v368 = vmul.f32 %v220, %v353
    %v369 = vmul.f32 %v223, %v355
    %v370 = vmul.f32 %v226, %v357
    %v371 = vmul.f32 %v229, %v359
    %v372 = vmul.f32 %v232, %v361
    %v373 = vmul.f32 %v235, %v363
    %v374 = vmul.f32 %v238, %v365
    %v375 = vlog2.pop %v367
    %v376 = vmul.f32 %v375, 0.6931472
    %v377 = vlog2.pop %v368
    %v378 = vmul.f32 %v377, 0.6931472
    %v379 = vlog2.pop %v369
    %v380 = vmul.f32 %v379, 0.6931472
    %v381 = vlog2.pop %v370
    %v382 = vmul.f32 %v381, 0.6931472
    %v383 = vlog2.pop %v371
    %v384 = vmul.f32 %v383, 0.6931472
    %v385 = vlog2.pop %v372
    %v386 = vmul.f32 %v385, 0.6931472
    %v387 = vlog2.pop %v373
    %v388 = vmul.f32 %v387, 0.6931472
    %v389 = vlog2.pop %v374
    %v390 = vmul.f32 %v389, 0.6931472
    %v391 = vadd.f32 %v352, %v376
    %v392 = vadd.f32 %v354, %v378
    %v393 = vadd.f32 %v356, %v380
    %v394 = vadd.f32 %v358, %v382
    %v395 = vadd.f32 %v360, %v384
    %v396 = vadd.f32 %v362, %v386
    %v397 = vadd.f32 %v364, %v388
    %v398 = vadd.f32 %v366, %v390
    %vm399 = vcmask 7168
    %400 = vst.msk [vmem:[%s2] sm:$0xff] %vm399, %v391
    %401 = vst.msk [vmem:[%s2 + $0x8] sm:$0xff] %vm399, %v392
    %402 = vst.msk [vmem:[%s2 + $0x10] sm:$0xff] %vm399, %v393
    %403 = vst.msk [vmem:[%s2 + $0x18] sm:$0xff] %vm399, %v394
    %404 = vst.msk [vmem:[%s2 + $0x20] sm:$0xff] %vm399, %v395
    %405 = vst.msk [vmem:[%s2 + $0x28] sm:$0xff] %vm399, %v396
    %406 = vst.msk [vmem:[%s2 + $0x30] sm:$0xff] %vm399, %v397
    %407 = vst.msk [vmem:[%s2 + $0x38] sm:$0xff] %vm399, %v398
    // Predicated region
    $region18: #{tpu_custom_call.1} parent=1 // pred_check
      _
    $region19: #{tpu_custom_call.1} parent=1 // pred_check_branch
      %409 = sbr.rel (0) target = $region21
    $region20: #{tpu_custom_call.1} parent=1 // pred_region
      _
    $region21: #{tpu_custom_call.1} parent=1 // pred_fallthru
      _
    // Predicated region
    $region22: #{tpu_custom_call.1} parent=1 // pred_check
      _
    $region23: #{tpu_custom_call.1} parent=1 // pred_check_branch
      %411 = sbr.rel (0) target = $region25
    $region24: #{tpu_custom_call.1} parent=1 // pred_region
      _
    $region25: #{tpu_custom_call.1} parent=1 // pred_fallthru
      _
    %412 = vsyncpa [#allocation3], 1
    %413 = vsyncpa [#allocation5], 1

</llo_original>
